<compile_context>
chip_gen: v7x
topology: tpu7x:2x2x1
jax: 0.10.0
libtpu: 0.0.40
codegen_flags: <defaults>
</compile_context>

<pallas_src>
import math

import jax
import jax.numpy as jnp
from jax.experimental import pallas as pl
from jax.experimental.pallas import tpu as pltpu


def _round_up(x, m):
    return ((x + m - 1) // m) * m


def _cdiv(a, b):
    return -(-a // b)


def _make_stats_kernel(tile_r, acc_r, lane, tiles_per_split, r_valid):
    """Per-(group, split) partial sufficient statistics.

    The tile fold (TILE_R, LANE) -> (ACC_R, LANE) reduces only the leading
    (non-layout) axis, so it lowers to plain elementwise vreg adds (VPU);
    all cross-lane / sublane reduction is deferred to the JAX finalize.
    """

    def kernel(pred_ref, true_ref, out_ref):
        s = pl.program_id(1)
        t = pl.program_id(2)

        # Zero the resident (1,1,5,ACC_R,LANE) accumulator block at the first
        # reduction step of this (group, split).
        @pl.when(t == 0)
        def _init():
            out_ref[...] = jnp.zeros(out_ref.shape, dtype=out_ref.dtype)

        x = pred_ref[0].astype(jnp.float32)   # (tile_r, lane)
        y = true_ref[0].astype(jnp.float32)

        def fold(v):
            if tile_r == acc_r:
                return v
            return v.reshape(tile_r // acc_r, acc_r, lane).sum(axis=0)

        def accumulate(xv, yv):
            out_ref[0, 0, 0] += fold(xv)
            out_ref[0, 0, 1] += fold(yv)
            out_ref[0, 0, 2] += fold(xv * xv)
            out_ref[0, 0, 3] += fold(yv * yv)
            out_ref[0, 0, 4] += fold(xv * yv)

        # Intended (unclamped) global row-tile index and starting row.
        start = (s * tiles_per_split + t) * tile_r
        is_edge = start + tile_r > r_valid

        @pl.when(jnp.logical_not(is_edge))
        def _bulk():
            accumulate(x, y)

        # Ragged last tile, or a fully-masked split-padding step whose block
        # index was clamped in the index_map: mask invalid rows to zero.
        @pl.when(is_edge)
        def _edge():
            rows = jax.lax.broadcasted_iota(jnp.int32, (tile_r, lane), 0)
            keep = (rows + start) < r_valid
            accumulate(jnp.where(keep, x, 0.0), jnp.where(keep, y, 0.0))

    return kernel


def pcc_loss(y_pred, y_true, label_dim=1, include_batch_dim=True,
             tile_bytes=2 * 1024 * 1024):
    """JAX/Pallas equivalent of PCCLoss.forward. y_pred, y_true: (B, T*C)."""
    assert y_pred.ndim == 2, "Error: only support 2-dim (B, T*C) or (B,C) input!"
    assert y_pred.shape == y_true.shape
    batch_size = y_pred.shape[0]
    total = y_pred.size
    c = int(label_dim)

    bv = 1 if include_batch_dim else batch_size
    assert total % (bv * c) == 0, (
        "input numel must be divisible by label_dim (and batch), like torch.view")
    m = total // (bv * c)                      # per-group reduction length
    if not include_batch_dim:
        assert m > 1, (
            "Error: do not support video-level task, please set include_batch_dim=True!")

    # ---- layout: channels ride the lane axis; pure reshape, no transpose ---
    lane = (128 * c) // math.gcd(128, c)       # lcm(128, label_dim)
    if lane > 1024:
        # Exotic (large, non power-of-two) label_dim: fall back to an explicit
        # channel transpose so channels become independent row groups.
        # TODO(synk): fold this stride-c gather into the BlockSpec index_map
        # so exotic label_dims are transpose-free as well.
        y_pred = jnp.transpose(y_pred.reshape(bv, m, c), (0, 2, 1)).reshape(bv * c, m)
        y_true = jnp.transpose(y_true.reshape(bv, m, c), (0, 2, 1)).reshape(bv * c, m)
        bv, c, lane = bv * c, 1, 128

    flat_len = total // bv                     # elements per bv-group row
    yp = y_pred.reshape(bv, flat_len)
    yt = y_true.reshape(bv, flat_len)

    flat_pad = _round_up(flat_len, lane)
    if flat_pad != flat_len:
        # Minimal zero pad (< lane elems per group) so the lane-dense reshape
        # exists; exact since stats are plain sums and the divisor is true M.
        # TODO(synk): replace with an in-kernel lane mask to avoid this copy
        # when the per-group length is not a multiple of `lane`.
        pad = ((0, 0), (0, flat_pad - flat_len))
        yp, yt = jnp.pad(yp, pad), jnp.pad(yt, pad)

    r_valid = flat_pad // lane
    yp = yp.reshape(bv, r_valid, lane)
    yt = yt.reshape(bv, r_valid, lane)

    # ---- tiling -------------------------------------------------------------
    itemsize = yp.dtype.itemsize
    pack = max(8, 32 // max(1, itemsize))      # sublane packing for narrow dtypes
    target_r = max(pack, (tile_bytes // (lane * itemsize)) // pack * pack)
    if r_valid < 8:
        tile_r = r_valid                       # full second-to-last dim
    else:
        tile_r = min(target_r, (r_valid // 8) * 8)
    acc_r = min(8, tile_r)

    n_row_tiles = _cdiv(r_valid, tile_r)
    # Megacore (v7x): when there is only one bv-group, split the reduction in
    # two so both TensorCores stream half of HBM.  Harmless on 1-TC chips.
    n_splits = 2 if (bv == 1 and n_row_tiles >= 2) else 1
    tiles_per_split = _cdiv(n_row_tiles, n_splits)
    last_tile = n_row_tiles - 1

    def in_map(g, s, t):
        # Clamp: steps past the last valid tile (split padding) re-read the
        # last tile; the kernel masks their contribution to zero.
        return (g, jnp.minimum(s * tiles_per_split + t, last_tile), 0)

    kernel = _make_stats_kernel(tile_r, acc_r, lane, tiles_per_split, r_valid)

    stats = pl.pallas_call(
        kernel,
        out_shape=jax.ShapeDtypeStruct((bv, n_splits, 5, acc_r, lane),
                                       jnp.float32),
        grid_spec=pltpu.PrefetchScalarGridSpec(
            num_scalar_prefetch=0,
            grid=(bv, n_splits, tiles_per_split),
            in_specs=[
                pl.BlockSpec((1, tile_r, lane), in_map),
                pl.BlockSpec((1, tile_r, lane), in_map),
            ],
            out_specs=pl.BlockSpec((1, 1, 5, acc_r, lane),
                                   lambda g, s, t: (g, s, 0, 0, 0)),
        ),
        compiler_params=pltpu.CompilerParams(
            # reduction (row-tile) axis is innermost & sequential; the
            # (group, split) axes are independent -> megacore-parallel.
            dimension_semantics=("parallel", "parallel", "arbitrary")),
    )(yp, yt)

    # ---- tiny finalize in plain JAX (per-channel combine + PCC) ------------
    st = stats.sum(axis=(1, 3))                          # (bv, 5, lane)
    st = st.reshape(bv, 5, lane // c, c).sum(axis=2)     # (bv, 5, c)
    st = jnp.transpose(st, (0, 2, 1)).reshape(bv * c, 5)  # (G, 5)
    sx, sy, sxx, syy, sxy = (st[:, i] for i in range(5))
    inv_m = 1.0 / m
    mean_x, mean_y = sx * inv_m, sy * inv_m
    # Clamp: single-pass E[x^2]-mean^2 can go slightly negative from
    # cancellation; a NaN out of sqrt is worse than a tiny bias.
    var_x = jnp.maximum(sxx * inv_m - mean_x * mean_x, 0.0)
    var_y = jnp.maximum(syy * inv_m - mean_y * mean_y, 0.0)
    cov = sxy * inv_m - mean_x * mean_y
    pcc = cov / (jnp.sqrt(var_x * var_y) + 1e-6)          # eps after sqrt
    return 1.0 - jnp.mean(pcc)


def _pcc_loss_ref(y_pred, y_true, label_dim=1, include_batch_dim=True):
    """Pure-JAX two-pass reference mirroring the PyTorch module exactly."""
    batch_size = y_pred.shape[0]
    if include_batch_dim:
        yp = y_pred.reshape(1, -1, label_dim)
        yt = y_true.reshape(1, -1, label_dim)
    else:
        yp = y_pred.reshape(batch_size, -1, label_dim)
        yt = y_true.reshape(batch_size, -1, label_dim)
    yt_mean = jnp.mean(yt, axis=1, keepdims=True)
    yp_mean = jnp.mean(yp, axis=1, keepdims=True)
    yt_var = jnp.mean((yt - yt_mean) ** 2, axis=1, keepdims=True)
    yp_var = jnp.mean((yp - yp_mean) ** 2, axis=1, keepdims=True)
    cov = jnp.mean((yt - yt_mean) * (yp - yp_mean), axis=1, keepdims=True)
    pcc = jnp.mean(cov / (jnp.sqrt(yt_var * yp_var) + 1e-6))
    return 1.0 - pcc


def _check(name, got, want, atol=1e-4, rtol=1e-4):
    got = jax.block_until_ready(got)
    want = jax.block_until_ready(want)
    assert jnp.allclose(got, want, atol=atol, rtol=rtol), (name, got, want)


if __name__ == "__main__":
    key = jax.random.PRNGKey(0)
    k1, k2 = jax.random.split(key)

    # Small frame-level input: B=2, T*C = 128.
    B, TC = 2, 128
    y_pred = jax.random.normal(k1, (B, TC), dtype=jnp.float32)
    y_true = 0.5 * y_pred + 0.5 * jax.random.normal(k2, (B, TC), dtype=jnp.float32)

    # 1) default: label_dim=1, include_batch_dim=True (G=1).
    _check("default",
           pcc_loss(y_pred, y_true),
           _pcc_loss_ref(y_pred, y_true))

    # 2) per-sample statistics: include_batch_dim=False (G=B).
    _check("per_sample",
           pcc_loss(y_pred, y_true, include_batch_dim=False),
           _pcc_loss_ref(y_pred, y_true, include_batch_dim=False))

    # 3) multi-channel labels on the lane axis (no transpose): label_dim=2.
    _check("label_dim2",
           pcc_loss(y_pred, y_true, label_dim=2),
           _pcc_loss_ref(y_pred, y_true, label_dim=2))

    # 4) label_dim=2 + per-sample groups (G = 2*B).
    _check("label_dim2_per_sample",
           pcc_loss(y_pred, y_true, label_dim=2, include_batch_dim=False),
           _pcc_loss_ref(y_pred, y_true, label_dim=2, include_batch_dim=False))

    # 5) multi-tile + megacore split + ragged-edge mask + clamped padding
    #    steps: tiny tiles force 5 row tiles split over 2 parallel splits.
    k3, k4 = jax.random.split(k2)
    yp_big = jax.random.normal(k3, (2, 2112), dtype=jnp.float32)
    yt_big = 0.3 * yp_big + jax.random.normal(k4, (2, 2112), dtype=jnp.float32)
    _check("ragged_multi_tile",
           pcc_loss(yp_big, yt_big, tile_bytes=4096),
           _pcc_loss_ref(yp_big, yt_big))

    # 6) per-group length not a multiple of 128 (minimal zero-pad path).
    _check("lane_pad",
           pcc_loss(y_pred[:, :96], y_true[:, :96]),
           _pcc_loss_ref(y_pred[:, :96], y_true[:, :96]))

    print("KERNEL_OK")
</pallas_src>

<mosaic_0001>
module attributes {stable_mosaic.version = 11 : i64} {
  func.func @kernel(%arg0: i32, %arg1: i32, %arg2: i32, %arg3: memref<1x2x128xf32, #tpu.memory_space<vmem>>, %arg4: memref<1x2x128xf32, #tpu.memory_space<vmem>>, %arg5: memref<1x1x5x2x128xf32, #tpu.memory_space<vmem>>) attributes {dimension_semantics = [#tpu.dimension_semantics<parallel>, #tpu.dimension_semantics<parallel>, #tpu.dimension_semantics<arbitrary>], iteration_bounds = array<i64: 1, 1, 1>, scalar_prefetch = 0 : i64, scratch_operands = 0 : i64, tpu.core_type = #tpu.core_type<tc>, window_params = [{transform_indices = @transform_0, window_bounds = array<i64: 1, 2, 128>}, {transform_indices = @transform_1, window_bounds = array<i64: 1, 2, 128>}, {transform_indices = @transform_2, window_bounds = array<i64: 1, 1, 5, 2, 128>}]} {
    %c0_i32 = arith.constant 0 : i32
    %0 = arith.cmpi eq, %arg2, %c0_i32 : i32
    %1 = arith.extui %0 : i1 to i32
    %c0_i32_0 = arith.constant 0 : i32
    %2 = arith.cmpi ne, %1, %c0_i32_0 : i32
    scf.if %2 {
      %cst = arith.constant 0.000000e+00 : f32
      %17 = vector.broadcast %cst : f32 to vector<1x1x5x2x128xf32>
      %c0_10 = arith.constant 0 : index
      %c0_11 = arith.constant 0 : index
      %c0_12 = arith.constant 0 : index
      %c0_13 = arith.constant 0 : index
      %c0_14 = arith.constant 0 : index
      %18 = vector.load %arg5[%c0_10, %c0_11, %c0_12, %c0_13, %c0_14] : memref<1x1x5x2x128xf32, #tpu.memory_space<vmem>>, vector<1x1x5x2x128xf32>
      tpu.vector_store %arg5[%c0_10, %c0_11, %c0_12, %c0_13, %c0_14], %17 {strides = array<i32>} : memref<1x1x5x2x128xf32, #tpu.memory_space<vmem>>, vector<1x1x5x2x128xf32>,
    } else {
    }
    %c0 = arith.constant 0 : index
    %c0_1 = arith.constant 0 : index
    %c0_2 = arith.constant 0 : index
    %3 = vector.load %arg3[%c0, %c0_1, %c0_2] : memref<1x2x128xf32, #tpu.memory_space<vmem>>, vector<1x2x128xf32>
    %4 = vector.shape_cast %3 : vector<1x2x128xf32> to vector<2x128xf32>
    %c0_3 = arith.constant 0 : index
    %c0_4 = arith.constant 0 : index
    %c0_5 = arith.constant 0 : index
    %5 = vector.load %arg4[%c0_3, %c0_4, %c0_5] : memref<1x2x128xf32, #tpu.memory_space<vmem>>, vector<1x2x128xf32>
    %6 = vector.shape_cast %5 : vector<1x2x128xf32> to vector<2x128xf32>
    %c1_i32 = arith.constant 1 : i32
    %7 = arith.muli %arg1, %c1_i32 : i32
    %8 = arith.addi %7, %arg2 : i32
    %c2_i32 = arith.constant 2 : i32
    %9 = arith.muli %8, %c2_i32 : i32
    %c2_i32_6 = arith.constant 2 : i32
    %10 = arith.addi %9, %c2_i32_6 : i32
    %c2_i32_7 = arith.constant 2 : i32
    %11 = arith.cmpi sgt, %10, %c2_i32_7 : i32
    %true = arith.constant true
    %12 = arith.xori %11, %true : i1
    %13 = arith.extui %12 : i1 to i32
    %c0_i32_8 = arith.constant 0 : i32
    %14 = arith.cmpi ne, %13, %c0_i32_8 : i32
    scf.if %14 {
      %c0_10 = arith.constant 0 : index
      %c0_11 = arith.constant 0 : index
      %c0_12 = arith.constant 0 : index
      %c0_13 = arith.constant 0 : index
      %c0_14 = arith.constant 0 : index
      %17 = vector.load %arg5[%c0_10, %c0_11, %c0_12, %c0_13, %c0_14] : memref<1x1x5x2x128xf32, #tpu.memory_space<vmem>>, vector<1x1x1x2x128xf32>
      %18 = vector.shape_cast %17 : vector<1x1x1x2x128xf32> to vector<2x128xf32>
      %19 = arith.addf %18, %4 : vector<2x128xf32>
      %c0_15 = arith.constant 0 : index
      %c0_16 = arith.constant 0 : index
      %c0_17 = arith.constant 0 : index
      %c0_18 = arith.constant 0 : index
      %c0_19 = arith.constant 0 : index
      %20 = vector.load %arg5[%c0_15, %c0_16, %c0_17, %c0_18, %c0_19] : memref<1x1x5x2x128xf32, #tpu.memory_space<vmem>>, vector<1x1x1x2x128xf32>
      %21 = vector.shape_cast %20 : vector<1x1x1x2x128xf32> to vector<2x128xf32>
      %22 = vector.shape_cast %19 : vector<2x128xf32> to vector<1x1x1x2x128xf32>
      tpu.vector_store %arg5[%c0_15, %c0_16, %c0_17, %c0_18, %c0_19], %22 {strides = array<i32>} : memref<1x1x5x2x128xf32, #tpu.memory_space<vmem>>, vector<1x1x1x2x128xf32>,
      %c0_20 = arith.constant 0 : index
      %c0_21 = arith.constant 0 : index
      %c1 = arith.constant 1 : index
      %c0_22 = arith.constant 0 : index
      %c0_23 = arith.constant 0 : index
      %23 = vector.load %arg5[%c0_20, %c0_21, %c1, %c0_22, %c0_23] : memref<1x1x5x2x128xf32, #tpu.memory_space<vmem>>, vector<1x1x1x2x128xf32>
      %24 = vector.shape_cast %23 : vector<1x1x1x2x128xf32> to vector<2x128xf32>
      %25 = arith.addf %24, %6 : vector<2x128xf32>
      %c0_24 = arith.constant 0 : index
      %c0_25 = arith.constant 0 : index
      %c1_26 = arith.constant 1 : index
      %c0_27 = arith.constant 0 : index
      %c0_28 = arith.constant 0 : index
      %26 = vector.load %arg5[%c0_24, %c0_25, %c1_26, %c0_27, %c0_28] : memref<1x1x5x2x128xf32, #tpu.memory_space<vmem>>, vector<1x1x1x2x128xf32>
      %27 = vector.shape_cast %26 : vector<1x1x1x2x128xf32> to vector<2x128xf32>
      %28 = vector.shape_cast %25 : vector<2x128xf32> to vector<1x1x1x2x128xf32>
      tpu.vector_store %arg5[%c0_24, %c0_25, %c1_26, %c0_27, %c0_28], %28 {strides = array<i32>} : memref<1x1x5x2x128xf32, #tpu.memory_space<vmem>>, vector<1x1x1x2x128xf32>,
      %c0_29 = arith.constant 0 : index
      %c0_30 = arith.constant 0 : index
      %c2 = arith.constant 2 : index
      %c0_31 = arith.constant 0 : index
      %c0_32 = arith.constant 0 : index
      %29 = vector.load %arg5[%c0_29, %c0_30, %c2, %c0_31, %c0_32] : memref<1x1x5x2x128xf32, #tpu.memory_space<vmem>>, vector<1x1x1x2x128xf32>
      %30 = vector.shape_cast %29 : vector<1x1x1x2x128xf32> to vector<2x128xf32>
      %31 = arith.mulf %4, %4 : vector<2x128xf32>
      %32 = arith.addf %30, %31 : vector<2x128xf32>
      %c0_33 = arith.constant 0 : index
      %c0_34 = arith.constant 0 : index
      %c2_35 = arith.constant 2 : index
      %c0_36 = arith.constant 0 : index
      %c0_37 = arith.constant 0 : index
      %33 = vector.load %arg5[%c0_33, %c0_34, %c2_35, %c0_36, %c0_37] : memref<1x1x5x2x128xf32, #tpu.memory_space<vmem>>, vector<1x1x1x2x128xf32>
      %34 = vector.shape_cast %33 : vector<1x1x1x2x128xf32> to vector<2x128xf32>
      %35 = vector.shape_cast %32 : vector<2x128xf32> to vector<1x1x1x2x128xf32>
      tpu.vector_store %arg5[%c0_33, %c0_34, %c2_35, %c0_36, %c0_37], %35 {strides = array<i32>} : memref<1x1x5x2x128xf32, #tpu.memory_space<vmem>>, vector<1x1x1x2x128xf32>,
      %c0_38 = arith.constant 0 : index
      %c0_39 = arith.constant 0 : index
      %c3 = arith.constant 3 : index
      %c0_40 = arith.constant 0 : index
      %c0_41 = arith.constant 0 : index
      %36 = vector.load %arg5[%c0_38, %c0_39, %c3, %c0_40, %c0_41] : memref<1x1x5x2x128xf32, #tpu.memory_space<vmem>>, vector<1x1x1x2x128xf32>
      %37 = vector.shape_cast %36 : vector<1x1x1x2x128xf32> to vector<2x128xf32>
      %38 = arith.mulf %6, %6 : vector<2x128xf32>
      %39 = arith.addf %37, %38 : vector<2x128xf32>
      %c0_42 = arith.constant 0 : index
      %c0_43 = arith.constant 0 : index
      %c3_44 = arith.constant 3 : index
      %c0_45 = arith.constant 0 : index
      %c0_46 = arith.constant 0 : index
      %40 = vector.load %arg5[%c0_42, %c0_43, %c3_44, %c0_45, %c0_46] : memref<1x1x5x2x128xf32, #tpu.memory_space<vmem>>, vector<1x1x1x2x128xf32>
      %41 = vector.shape_cast %40 : vector<1x1x1x2x128xf32> to vector<2x128xf32>
      %42 = vector.shape_cast %39 : vector<2x128xf32> to vector<1x1x1x2x128xf32>
      tpu.vector_store %arg5[%c0_42, %c0_43, %c3_44, %c0_45, %c0_46], %42 {strides = array<i32>} : memref<1x1x5x2x128xf32, #tpu.memory_space<vmem>>, vector<1x1x1x2x128xf32>,
      %c0_47 = arith.constant 0 : index
      %c0_48 = arith.constant 0 : index
      %c4 = arith.constant 4 : index
      %c0_49 = arith.constant 0 : index
      %c0_50 = arith.constant 0 : index
      %43 = vector.load %arg5[%c0_47, %c0_48, %c4, %c0_49, %c0_50] : memref<1x1x5x2x128xf32, #tpu.memory_space<vmem>>, vector<1x1x1x2x128xf32>
      %44 = vector.shape_cast %43 : vector<1x1x1x2x128xf32> to vector<2x128xf32>
      %45 = arith.mulf %4, %6 : vector<2x128xf32>
      %46 = arith.addf %44, %45 : vector<2x128xf32>
      %c0_51 = arith.constant 0 : index
      %c0_52 = arith.constant 0 : index
      %c4_53 = arith.constant 4 : index
      %c0_54 = arith.constant 0 : index
      %c0_55 = arith.constant 0 : index
      %47 = vector.load %arg5[%c0_51, %c0_52, %c4_53, %c0_54, %c0_55] : memref<1x1x5x2x128xf32, #tpu.memory_space<vmem>>, vector<1x1x1x2x128xf32>
      %48 = vector.shape_cast %47 : vector<1x1x1x2x128xf32> to vector<2x128xf32>
      %49 = vector.shape_cast %46 : vector<2x128xf32> to vector<1x1x1x2x128xf32>
      tpu.vector_store %arg5[%c0_51, %c0_52, %c4_53, %c0_54, %c0_55], %49 {strides = array<i32>} : memref<1x1x5x2x128xf32, #tpu.memory_space<vmem>>, vector<1x1x1x2x128xf32>,
    } else {
    }
    %15 = arith.extui %11 : i1 to i32
    %c0_i32_9 = arith.constant 0 : i32
    %16 = arith.cmpi ne, %15, %c0_i32_9 : i32
    scf.if %16 {
      %17 = tpu.iota {dimensions = array<i32: 0>} : vector<2x128xi32>
      %18 = vector.broadcast %9 : i32 to vector<2x128xi32>
      %19 = arith.addi %17, %18 : vector<2x128xi32>
      %c2_i32_10 = arith.constant 2 : i32
      %20 = vector.broadcast %c2_i32_10 : i32 to vector<2x128xi32>
      %21 = arith.cmpi slt, %19, %20 : vector<2x128xi32>
      %cst = arith.constant 0.000000e+00 : f32
      %22 = vector.broadcast %cst : f32 to vector<2x128xf32>
      %23 = arith.select %21, %4, %22 : vector<2x128xi1>, vector<2x128xf32>
      %cst_11 = arith.constant 0.000000e+00 : f32
      %24 = vector.broadcast %cst_11 : f32 to vector<2x128xf32>
      %25 = arith.select %21, %6, %24 : vector<2x128xi1>, vector<2x128xf32>
      %c0_12 = arith.constant 0 : index
      %c0_13 = arith.constant 0 : index
      %c0_14 = arith.constant 0 : index
      %c0_15 = arith.constant 0 : index
      %c0_16 = arith.constant 0 : index
      %26 = vector.load %arg5[%c0_12, %c0_13, %c0_14, %c0_15, %c0_16] : memref<1x1x5x2x128xf32, #tpu.memory_space<vmem>>, vector<1x1x1x2x128xf32>
      %27 = vector.shape_cast %26 : vector<1x1x1x2x128xf32> to vector<2x128xf32>
      %28 = arith.addf %27, %23 : vector<2x128xf32>
      %c0_17 = arith.constant 0 : index
      %c0_18 = arith.constant 0 : index
      %c0_19 = arith.constant 0 : index
      %c0_20 = arith.constant 0 : index
      %c0_21 = arith.constant 0 : index
      %29 = vector.load %arg5[%c0_17, %c0_18, %c0_19, %c0_20, %c0_21] : memref<1x1x5x2x128xf32, #tpu.memory_space<vmem>>, vector<1x1x1x2x128xf32>
      %30 = vector.shape_cast %29 : vector<1x1x1x2x128xf32> to vector<2x128xf32>
      %31 = vector.shape_cast %28 : vector<2x128xf32> to vector<1x1x1x2x128xf32>
      tpu.vector_store %arg5[%c0_17, %c0_18, %c0_19, %c0_20, %c0_21], %31 {strides = array<i32>} : memref<1x1x5x2x128xf32, #tpu.memory_space<vmem>>, vector<1x1x1x2x128xf32>,
      %c0_22 = arith.constant 0 : index
      %c0_23 = arith.constant 0 : index
      %c1 = arith.constant 1 : index
      %c0_24 = arith.constant 0 : index
      %c0_25 = arith.constant 0 : index
      %32 = vector.load %arg5[%c0_22, %c0_23, %c1, %c0_24, %c0_25] : memref<1x1x5x2x128xf32, #tpu.memory_space<vmem>>, vector<1x1x1x2x128xf32>
      %33 = vector.shape_cast %32 : vector<1x1x1x2x128xf32> to vector<2x128xf32>
      %34 = arith.addf %33, %25 : vector<2x128xf32>
      %c0_26 = arith.constant 0 : index
      %c0_27 = arith.constant 0 : index
      %c1_28 = arith.constant 1 : index
      %c0_29 = arith.constant 0 : index
      %c0_30 = arith.constant 0 : index
      %35 = vector.load %arg5[%c0_26, %c0_27, %c1_28, %c0_29, %c0_30] : memref<1x1x5x2x128xf32, #tpu.memory_space<vmem>>, vector<1x1x1x2x128xf32>
      %36 = vector.shape_cast %35 : vector<1x1x1x2x128xf32> to vector<2x128xf32>
      %37 = vector.shape_cast %34 : vector<2x128xf32> to vector<1x1x1x2x128xf32>
      tpu.vector_store %arg5[%c0_26, %c0_27, %c1_28, %c0_29, %c0_30], %37 {strides = array<i32>} : memref<1x1x5x2x128xf32, #tpu.memory_space<vmem>>, vector<1x1x1x2x128xf32>,
      %c0_31 = arith.constant 0 : index
      %c0_32 = arith.constant 0 : index
      %c2 = arith.constant 2 : index
      %c0_33 = arith.constant 0 : index
      %c0_34 = arith.constant 0 : index
      %38 = vector.load %arg5[%c0_31, %c0_32, %c2, %c0_33, %c0_34] : memref<1x1x5x2x128xf32, #tpu.memory_space<vmem>>, vector<1x1x1x2x128xf32>
      %39 = vector.shape_cast %38 : vector<1x1x1x2x128xf32> to vector<2x128xf32>
      %40 = arith.mulf %23, %23 : vector<2x128xf32>
      %41 = arith.addf %39, %40 : vector<2x128xf32>
      %c0_35 = arith.constant 0 : index
      %c0_36 = arith.constant 0 : index
      %c2_37 = arith.constant 2 : index
      %c0_38 = arith.constant 0 : index
      %c0_39 = arith.constant 0 : index
      %42 = vector.load %arg5[%c0_35, %c0_36, %c2_37, %c0_38, %c0_39] : memref<1x1x5x2x128xf32, #tpu.memory_space<vmem>>, vector<1x1x1x2x128xf32>
      %43 = vector.shape_cast %42 : vector<1x1x1x2x128xf32> to vector<2x128xf32>
      %44 = vector.shape_cast %41 : vector<2x128xf32> to vector<1x1x1x2x128xf32>
      tpu.vector_store %arg5[%c0_35, %c0_36, %c2_37, %c0_38, %c0_39], %44 {strides = array<i32>} : memref<1x1x5x2x128xf32, #tpu.memory_space<vmem>>, vector<1x1x1x2x128xf32>,
      %c0_40 = arith.constant 0 : index
      %c0_41 = arith.constant 0 : index
      %c3 = arith.constant 3 : index
      %c0_42 = arith.constant 0 : index
      %c0_43 = arith.constant 0 : index
      %45 = vector.load %arg5[%c0_40, %c0_41, %c3, %c0_42, %c0_43] : memref<1x1x5x2x128xf32, #tpu.memory_space<vmem>>, vector<1x1x1x2x128xf32>
      %46 = vector.shape_cast %45 : vector<1x1x1x2x128xf32> to vector<2x128xf32>
      %47 = arith.mulf %25, %25 : vector<2x128xf32>
      %48 = arith.addf %46, %47 : vector<2x128xf32>
      %c0_44 = arith.constant 0 : index
      %c0_45 = arith.constant 0 : index
      %c3_46 = arith.constant 3 : index
      %c0_47 = arith.constant 0 : index
      %c0_48 = arith.constant 0 : index
      %49 = vector.load %arg5[%c0_44, %c0_45, %c3_46, %c0_47, %c0_48] : memref<1x1x5x2x128xf32, #tpu.memory_space<vmem>>, vector<1x1x1x2x128xf32>
      %50 = vector.shape_cast %49 : vector<1x1x1x2x128xf32> to vector<2x128xf32>
      %51 = vector.shape_cast %48 : vector<2x128xf32> to vector<1x1x1x2x128xf32>
      tpu.vector_store %arg5[%c0_44, %c0_45, %c3_46, %c0_47, %c0_48], %51 {strides = array<i32>} : memref<1x1x5x2x128xf32, #tpu.memory_space<vmem>>, vector<1x1x1x2x128xf32>,
      %c0_49 = arith.constant 0 : index
      %c0_50 = arith.constant 0 : index
      %c4 = arith.constant 4 : index
      %c0_51 = arith.constant 0 : index
      %c0_52 = arith.constant 0 : index
      %52 = vector.load %arg5[%c0_49, %c0_50, %c4, %c0_51, %c0_52] : memref<1x1x5x2x128xf32, #tpu.memory_space<vmem>>, vector<1x1x1x2x128xf32>
      %53 = vector.shape_cast %52 : vector<1x1x1x2x128xf32> to vector<2x128xf32>
      %54 = arith.mulf %23, %25 : vector<2x128xf32>
      %55 = arith.addf %53, %54 : vector<2x128xf32>
      %c0_53 = arith.constant 0 : index
      %c0_54 = arith.constant 0 : index
      %c4_55 = arith.constant 4 : index
      %c0_56 = arith.constant 0 : index
      %c0_57 = arith.constant 0 : index
      %56 = vector.load %arg5[%c0_53, %c0_54, %c4_55, %c0_56, %c0_57] : memref<1x1x5x2x128xf32, #tpu.memory_space<vmem>>, vector<1x1x1x2x128xf32>
      %57 = vector.shape_cast %56 : vector<1x1x1x2x128xf32> to vector<2x128xf32>
      %58 = vector.shape_cast %55 : vector<2x128xf32> to vector<1x1x1x2x128xf32>
      tpu.vector_store %arg5[%c0_53, %c0_54, %c4_55, %c0_56, %c0_57], %58 {strides = array<i32>} : memref<1x1x5x2x128xf32, #tpu.memory_space<vmem>>, vector<1x1x1x2x128xf32>,
    } else {
    }
    return
  }
  func.func @transform_0(%arg0: i32, %arg1: i32, %arg2: i32) -> (i32, i32, i32) {
    %c1_i32 = arith.constant 1 : i32
    %0 = arith.muli %arg1, %c1_i32 : i32
    %1 = arith.addi %0, %arg2 : i32
    %c0_i32 = arith.constant 0 : i32
    %2 = arith.minsi %1, %c0_i32 : i32
    %c0_i32_0 = arith.constant 0 : i32
    %c0_i32_1 = arith.constant 0 : i32
    return %arg0, %2, %c0_i32_0 : i32, i32, i32
  }
  func.func @transform_1(%arg0: i32, %arg1: i32, %arg2: i32) -> (i32, i32, i32) {
    %c1_i32 = arith.constant 1 : i32
    %0 = arith.muli %arg1, %c1_i32 : i32
    %1 = arith.addi %0, %arg2 : i32
    %c0_i32 = arith.constant 0 : i32
    %2 = arith.minsi %1, %c0_i32 : i32
    %c0_i32_0 = arith.constant 0 : i32
    %c0_i32_1 = arith.constant 0 : i32
    return %arg0, %2, %c0_i32_0 : i32, i32, i32
  }
  func.func @transform_2(%arg0: i32, %arg1: i32, %arg2: i32) -> (i32, i32, i32, i32, i32) {
    %c0_i32 = arith.constant 0 : i32
    %c0_i32_0 = arith.constant 0 : i32
    %c0_i32_1 = arith.constant 0 : i32
    %c0_i32_2 = arith.constant 0 : i32
    return %arg0, %arg1, %c0_i32, %c0_i32_0, %c0_i32_1 : i32, i32, i32, i32, i32
  }
}

</mosaic_0001>

<llo_original>
// kernel: tpu_custom_call.1
$region0: #{tpu_custom_call.1}
  #allocation0 [shape = 'u32[]', space=smem, size = 0x4, offset = 0x4, fixed_abs, tag = 'smem constant byte address 0x4 - core index']
  #allocation1 [shape = 'u32[144,128]{1,0:T(1,128)}', space=vmem, size = 0x12000, scoped, tag = 'internal scratch']
  %s0 = inlined_call_operand.hbm [shape: f32[1,2,128], index: 0, kind: input, shape index: {}]
  %s1 = inlined_call_operand.vmem [shape: f32[1,2,128], index: 1, kind: input, shape index: {}]
  %s2 = inlined_call_operand.hbm [shape: f32[1,1,5,2,128], index: 2, kind: output, shape index: {}]
  %s3 = sld [smem:[#allocation0]]
  $region34: #{tpu_custom_call.1} parent=0
    _
  %s5 = ssub.s32 1, %s3
  %s6 = scalar_select 0, %s5, %s3
  $region1: #{tpu_custom_call.1} parent=0
    #allocation2 [shape = 'u8[1024]{0}', space=vmem, size = 0x400, scoped, tag = 'input window, operand 0, single buffered']
    #allocation3 [shape = 's32[1]{0}', space=sflag, size = 0x4, scoped, tag = 'scoped memory for tpu_custom_call.1']
    #allocation4 [shape = 's32[1]{0}', space=sflag, size = 0x4, scoped, tag = 'scoped memory for tpu_custom_call.1']
    #allocation5 [shape = 'u8[5120]{0}', space=vmem, size = 0x1400, scoped, tag = 'output window, operand 0, single buffered']
    %7 = vsyncpa [#allocation3], 0
    %8 = vsyncpa [#allocation4], 0
    // Predicated region
    $region2: #{tpu_custom_call.1} parent=1 // pred_check
      _
    $region3: #{tpu_custom_call.1} parent=1 // pred_check_branch
      %10 = sbr.rel (0) target = $region5
    $region4: #{tpu_custom_call.1} parent=1 // pred_region
      %s11 = sadd.s32 0, 0
      %p12 = scmp.lt.s32.totalorder %s11, 0
      %s13 = scalar_select %p12, %s11, 0
      %s15 = ssub.s32 32, 32
      %16 = vsyncadd [#allocation3], %s15
      %s17 = smul.addr %s13, 32
      %s18 = scalar_lea.hbm %s0, %s17
      %s20 = sshll.u32 [#allocation2], 4
      %s21 = int_to_ptr.vmem [resolvable:$true] %s20
      %23 = dma.hbm_to_vmem [thread:$0]  %s18, 32, %s21, [#allocation3]
    $region5: #{tpu_custom_call.1} parent=1 // pred_fallthru
      _
    // Predicated region
    $region6: #{tpu_custom_call.1} parent=1 // pred_check
      _
    $region7: #{tpu_custom_call.1} parent=1 // pred_check_branch
      %25 = sbr.rel (0) target = $region9
    $region8: #{tpu_custom_call.1} parent=1 // pred_region
      %s26 = sadd.s32 0, 0
      %p27 = scmp.lt.s32.totalorder %s26, 0
      %s28 = scalar_select %p27, %s26, 0
      %p29 = scmp.lt.s32.totalorder %s28, 0
      %s30 = scalar_select %p29, %s28, 0
      %s31 = smul.addr %s30, 2
      %s32 = scalar_lea.vmem %s1, %s31
      %s33 = sadd.s32 0, 0
      %p34 = scmp.lt.s32.totalorder %s33, 0
      %s35 = scalar_select %p34, %s33, 0
    $region9: #{tpu_custom_call.1} parent=1 // pred_fallthru
      _
    // Predicated region
    $region10: #{tpu_custom_call.1} parent=1 // pred_check
      _
    $region11: #{tpu_custom_call.1} parent=1 // pred_check_branch
      %37 = sbr.rel (0) target = $region13
    $region12: #{tpu_custom_call.1} parent=1 // pred_region
      %38 = dma.done [#allocation3], 32
    $region13: #{tpu_custom_call.1} parent=1 // pred_fallthru
      _
    %s39 = sadd.s32 0, 0
    %p40 = scmp.lt.s32.totalorder %s39, 0
    %s41 = scalar_select %p40, %s39, 0
    %p42 = scmp.lt.s32.totalorder %s41, 0
    %s43 = scalar_select %p42, %s41, 0
    %s44 = smul.addr %s43, 2
    %s45 = scalar_lea.vmem %s1, %s44
    %s46 = sadd.s32 0, 0
    %p47 = scmp.lt.s32.totalorder %s46, 0
    %s48 = scalar_select %p47, %s46, 0
    %s49 = sadd.s32 0, 0
    %p50 = scmp.lt.s32.totalorder %s49, 0
    %s51 = scalar_select %p50, %s49, 0
    %p52 = scmp.lt.s32.totalorder %s51, 0
    %s53 = scalar_select %p52, %s51, 0
    %s54 = smul.addr %s53, 2
    %s55 = scalar_lea.vmem %s1, %s54
    %s56 = sadd.s32 0, 0
    %p57 = scmp.lt.s32.totalorder %s56, 0
    %s58 = scalar_select %p57, %s56, 0
    %p59 = scmp.eq.s32.totalorder 0, 0
    // Predicated region
    $region14: #{tpu_custom_call.1} parent=1 // pred_check
      %p60 = pneg %p59
    $region15: #{tpu_custom_call.1} parent=1 // pred_check_branch
      %62 = sbr.rel (%p60) target = $region17
    $region16: #{tpu_custom_call.1} parent=1 // pred_region
      %63 = vst [vmem:[#allocation5] sm:$0x3] 0.0
      %64 = vst [vmem:[#allocation5 + $0x2] sm:$0x3] 0.0
      %65 = vst [vmem:[#allocation5 + $0x4] sm:$0x3] 0.0
      %66 = vst [vmem:[#allocation5 + $0x6] sm:$0x3] 0.0
      %67 = vst [vmem:[#allocation5 + $0x8] sm:$0x3] 0.0
    $region17: #{tpu_custom_call.1} parent=1 // pred_fallthru
      _
    %v68 = vld [vmem:[#allocation2] sm:$0x3]
    %v69 = vld [vmem:[%s55] sm:$0x3]
    %s70 = sadd.s32 0, 0
    %s71 = smul.u32 %s70, 2
    %s72 = sadd.s32 %s71, 2
    %p73 = scmp.gt.s32.totalorder %s72, 2
    %p74 = scmp.le.s32.totalorder %s72, 2
    // Predicated region
    $region18: #{tpu_custom_call.1} parent=1 // pred_check
      %p75 = pneg %p74
    $region19: #{tpu_custom_call.1} parent=1 // pred_check_branch
      %77 = sbr.rel (%p75) target = $region21
    $region20: #{tpu_custom_call.1} parent=1 // pred_region
      %v78 = vld [vmem:[#allocation5] sm:$0x3]
      %v79 = vadd.f32 %v78, %v68
      %80 = vst [vmem:[#allocation5] sm:$0x3] %v79
      %s81 = scalar_lea.vmem [#allocation5], 2
      %v82 = vld [vmem:[%s81] sm:$0x3]
      %v83 = vadd.f32 %v82, %v69
      %84 = vst [vmem:[%s81] sm:$0x3] %v83
      %s85 = scalar_lea.vmem [#allocation5], 4
      %v86 = vld [vmem:[%s85] sm:$0x3]
      %v87 = vmul.f32 %v68, %v68
      %v88 = vadd.f32 %v86, %v87
      %89 = vst [vmem:[%s85] sm:$0x3] %v88
      %s90 = scalar_lea.vmem [#allocation5], 6
      %v91 = vld [vmem:[%s90] sm:$0x3]
      %v92 = vmul.f32 %v69, %v69
      %v93 = vadd.f32 %v91, %v92
      %94 = vst [vmem:[%s90] sm:$0x3] %v93
      %s95 = scalar_lea.vmem [#allocation5], 8
      %v96 = vld [vmem:[%s95] sm:$0x3]
      %v97 = vmul.f32 %v68, %v69
      %v98 = vadd.f32 %v96, %v97
      %99 = vst [vmem:[%s95] sm:$0x3] %v98
    $region21: #{tpu_custom_call.1} parent=1 // pred_fallthru
      _
    // Predicated region
    $region22: #{tpu_custom_call.1} parent=1 // pred_check
      %p100 = pneg %p73
    $region23: #{tpu_custom_call.1} parent=1 // pred_check_branch
      %102 = sbr.rel (%p100) target = $region25
    $region24: #{tpu_custom_call.1} parent=1 // pred_region
      %v103 = vlaneseq
      %v104 = vshrl.u32 %v103, 7
      %v105 = vstv %s71
      %v106 = vadd.s32 %v104, %v105
      %vm107 = vcmp.lt.s32.totalorder %v106, 2
      %v108 = vsel %vm107, %v68, 0.0
      %v109 = vsel %vm107, %v69, 0.0
      %v110 = vld [vmem:[#allocation5] sm:$0x3]
      %v111 = vadd.f32 %v110, %v108
      %112 = vst [vmem:[#allocation5] sm:$0x3] %v111
      %s113 = scalar_lea.vmem [#allocation5], 2
      %v114 = vld [vmem:[%s113] sm:$0x3]
      %v115 = vadd.f32 %v114, %v109
      %116 = vst [vmem:[%s113] sm:$0x3] %v115
      %s117 = scalar_lea.vmem [#allocation5], 4
      %v118 = vld [vmem:[%s117] sm:$0x3]
      %v119 = vmul.f32 %v108, %v108
      %v120 = vadd.f32 %v118, %v119
      %121 = vst [vmem:[%s117] sm:$0x3] %v120
      %s122 = scalar_lea.vmem [#allocation5], 6
      %v123 = vld [vmem:[%s122] sm:$0x3]
      %v124 = vmul.f32 %v109, %v109
      %v125 = vadd.f32 %v123, %v124
      %126 = vst [vmem:[%s122] sm:$0x3] %v125
      %s127 = scalar_lea.vmem [#allocation5], 8
      %v128 = vld [vmem:[%s127] sm:$0x3]
      %v129 = vmul.f32 %v108, %v109
      %v130 = vadd.f32 %v128, %v129
      %131 = vst [vmem:[%s127] sm:$0x3] %v130
    $region25: #{tpu_custom_call.1} parent=1 // pred_fallthru
      _
    // Predicated region
    $region26: #{tpu_custom_call.1} parent=1 // pred_check
      _
    $region27: #{tpu_custom_call.1} parent=1 // pred_check_branch
      %133 = sbr.rel (0) target = $region29
    $region28: #{tpu_custom_call.1} parent=1 // pred_region
      %s135 = ssub.s32 160, 160
      %136 = vsyncadd [#allocation4], %s135
      %s137 = sshll.u32 [#allocation5], 4
      %s138 = int_to_ptr.vmem [resolvable:$true] %s137
      %143 = dma.vmem_to_hbm [thread:$0]  %s138, 160, %s2, [#allocation4], 32, 32, 2
    $region29: #{tpu_custom_call.1} parent=1 // pred_fallthru
      _
    // Predicated region
    $region30: #{tpu_custom_call.1} parent=1 // pred_check
      _
    $region31: #{tpu_custom_call.1} parent=1 // pred_check_branch
      %145 = sbr.rel (0) target = $region33
    $region32: #{tpu_custom_call.1} parent=1 // pred_region
      %146 = dma.done [#allocation4], 160
    $region33: #{tpu_custom_call.1} parent=1 // pred_fallthru
      _
    %147 = vsyncpa [#allocation3], 1
    %148 = vsyncpa [#allocation4], 1

</llo_original>
